<compile_context>
chip_gen: v7x
topology: tpu7x:2x2x1
jax: 0.10.0
libtpu: 0.0.40
codegen_flags: <defaults>
</compile_context>

<pallas_src>
import functools

import jax
import jax.numpy as jnp
from jax.experimental import pallas as pl
from jax.experimental.pallas import tpu as pltpu


def _centernet_loss_kernel(hm_pred_ref, hm_true_ref, om_pred_ref, om_true_ref,
                           out_ref, focal_acc, numpos_acc, offset_acc,
                           *, pos_pred_weight, tile_b, steps_per_core, batch,
                           needs_mask):
    step = pl.program_id(1)

    @pl.when(step == 0)
    def _init():
        focal_acc[...] = jnp.zeros_like(focal_acc)
        numpos_acc[...] = jnp.zeros_like(numpos_acc)
        offset_acc[...] = jnp.zeros_like(offset_acc)

    hp = hm_pred_ref[...].astype(jnp.float32)      # (tB, H, W)
    gt = hm_true_ref[...].astype(jnp.float32)      # (tB, H, W) — channel squeezed by spec

    pos = gt == 1.0                                # keypoints
    contrib = jnp.logical_or(pos, gt < 1.0)        # gt > 1 contributes nothing (as in ref)
    if needs_mask:
        # cdiv tiling: mask tail rows of the last real tile and whole padded tiles.
        row0 = (pl.program_id(0) * steps_per_core + step) * tile_b
        bidx = row0 + jax.lax.broadcasted_iota(jnp.int32, hp.shape, 0)
        valid = bidx < batch
        pos = jnp.logical_and(pos, valid)
        contrib = jnp.logical_and(contrib, valid)

    # Fused focal arithmetic: one EUP log + one polynomial select.
    pc = jnp.clip(hp, 1e-4, 1.0 - 1e-4)
    one_m_pc = 1.0 - pc
    one_m_gt = 1.0 - gt
    neg_w2 = one_m_gt * one_m_gt                   # (1 - gt)^2; squared again below
    log_t = jnp.log(jnp.where(pos, pc, one_m_pc))
    poly = jnp.where(pos, one_m_pc * one_m_pc, pc * pc * (neg_w2 * neg_w2))
    ppw = jnp.where(hp > 0.5, pos_pred_weight, 1.0)
    term = jnp.where(contrib, log_t * poly * ppw, 0.0)
    pos_f = pos.astype(jnp.float32)

    # Per-step accumulation: pure VPU adds into (H, W) f32 VMEM maps.
    focal_acc[...] += jnp.sum(term, axis=0)
    numpos_acc[...] += jnp.sum(pos_f, axis=0)

    # Offset loss: sum_c |om_pred - om_true| gathered where hm_true == 1, keeping
    # the reference's transposed om[:, x, y] indexing for keypoint (y, x).
    od = jnp.sum(jnp.abs(om_pred_ref[...].astype(jnp.float32)
                         - om_true_ref[...].astype(jnp.float32)), axis=1)  # (tB,H,W)
    offset_acc[...] += jnp.sum(pos_f * jnp.swapaxes(od, -1, -2), axis=0)

    @pl.when(step == pl.num_programs(1) - 1)
    def _finalize():
        focal_sum = jnp.sum(focal_acc[...])
        num_pos = jnp.sum(numpos_acc[...])
        off_sum = jnp.sum(offset_acc[...])
        lane = jax.lax.broadcasted_iota(jnp.int32, (8, 128), 1)
        sub = jax.lax.broadcasted_iota(jnp.int32, (8, 128), 0)
        plane = jnp.where(
            sub == 0,
            jnp.where(lane == 0, focal_sum,
                      jnp.where(lane == 1, num_pos,
                                jnp.where(lane == 2, off_sum, 0.0))),
            0.0)
        out_ref[0] = plane                         # full lane-dense store


def centernet_loss_multiball(hm_pred, om_pred, hm_true, om_true, *,
                             pos_pred_weight=2.0, l_off=1.0,
                             block_bytes_target=8 * 1024 * 1024,
                             temp_bytes_budget=24 * 1024 * 1024,
                             vmem_limit_bytes=48 * 1024 * 1024):
    """Pallas implementation of CenterNetLossMultiBall.forward (scalar loss).

    Callers should pass inputs in their native dtype (e.g. bf16); the kernel
    upcasts per tile, so pre-upcasting to f32 only doubles HBM traffic.
    """
    if hm_pred.ndim == 4 and hm_pred.shape[1] == 1:
        hm_pred = jnp.squeeze(hm_pred, axis=1)
    B, H, W = hm_pred.shape
    assert H == W, "transposed keypoint indexing in the reference requires H == W"
    if hm_true.ndim == 3:
        hm_true = hm_true[:, None]
    assert hm_true.shape == (B, 1, H, W), hm_true.shape
    assert om_pred.shape == om_true.shape
    assert om_pred.shape[0] == B and om_pred.shape[2:] == (H, W)
    C = om_pred.shape[1]

    # Batch tile chosen purely by footprint:
    #  - raw per-step input bytes ~<= block_bytes_target (double-buffered by Pallas)
    #  - f32 elementwise working set ~<= temp_bytes_budget (keeps v7x's 64 MiB safe)
    in_bytes_per_sample = H * W * (
        jnp.dtype(hm_pred.dtype).itemsize
        + jnp.dtype(hm_true.dtype).itemsize
        + C * (jnp.dtype(om_pred.dtype).itemsize + jnp.dtype(om_true.dtype).itemsize))
    f32_temp_bytes_per_sample = H * W * 4 * (8 + 2 * C)   # conservative live-temp count
    tile_b = max(1, min(B,
                        block_bytes_target // in_bytes_per_sample,
                        temp_bytes_budget // f32_temp_bytes_per_sample))

    num_tiles = pl.cdiv(B, tile_b)
    n_split = 2 if num_tiles >= 2 else 1            # feed both v7x TCs; harmless on 1-TC chips
    steps_per_core = pl.cdiv(num_tiles, n_split)
    last_tile = num_tiles - 1
    needs_mask = (n_split * steps_per_core * tile_b) > B

    def tile_idx(c, i):
        # Clamp padded tiles onto the last real tile; the kernel masks them out.
        return jnp.minimum(c * steps_per_core + i, last_tile)

    n_hm = B * H * W
    n_om = B * C * H * W
    cost = pl.CostEstimate(
        flops=int(22 * n_hm + 3 * n_om),
        transcendentals=int(n_hm),
        bytes_accessed=int(B * in_bytes_per_sample + n_split * 8 * 128 * 4),
    )

    kernel = functools.partial(_centernet_loss_kernel,
                               pos_pred_weight=float(pos_pred_weight),
                               tile_b=int(tile_b),
                               steps_per_core=int(steps_per_core),
                               batch=int(B),
                               needs_mask=bool(needs_mask))

    partial_sums = pl.pallas_call(
        kernel,
        out_shape=jax.ShapeDtypeStruct((n_split, 8, 128), jnp.float32),
        grid_spec=pltpu.PrefetchScalarGridSpec(
            num_scalar_prefetch=0,
            grid=(n_split, steps_per_core),
            in_specs=[
                pl.BlockSpec((tile_b, H, W),
                             lambda c, i: (tile_idx(c, i), 0, 0)),
                pl.BlockSpec((tile_b, pl.Squeezed(), H, W),
                             lambda c, i: (tile_idx(c, i), 0, 0, 0)),
                pl.BlockSpec((tile_b, C, H, W),
                             lambda c, i: (tile_idx(c, i), 0, 0, 0)),
                pl.BlockSpec((tile_b, C, H, W),
                             lambda c, i: (tile_idx(c, i), 0, 0, 0)),
            ],
            out_specs=pl.BlockSpec((1, 8, 128), lambda c, i: (c, 0, 0)),
            scratch_shapes=[
                pltpu.VMEM((H, W), jnp.float32),   # focal partial sums
                pltpu.VMEM((H, W), jnp.float32),   # num_pos partial sums
                pltpu.VMEM((H, W), jnp.float32),   # offset partial sums
            ],
        ),
        compiler_params=pltpu.CompilerParams(
            dimension_semantics=("parallel", "arbitrary"),
            vmem_limit_bytes=int(vmem_limit_bytes),
        ),
        cost_estimate=cost,
    )(hm_pred, hm_true, om_pred, om_true)

    focal_sum = jnp.sum(partial_sums[:, 0, 0])
    num_pos = jnp.sum(partial_sums[:, 0, 1])
    off_sum = jnp.sum(partial_sums[:, 0, 2])
    # num_pos == 0  ->  loss = -neg_loss (pos_loss is identically 0 then).
    keypoint_loss = jnp.where(num_pos > 0.0,
                              -focal_sum / jnp.maximum(num_pos, 1.0),
                              -focal_sum)
    return keypoint_loss + off_sum * l_off


def _reference_loss(hm_pred, om_pred, hm_true, om_true,
                    pos_pred_weight=2.0, l_off=1.0):
    """Pure-JAX reference (same intended semantics as the PyTorch module)."""
    hp = hm_pred.astype(jnp.float32)
    gt = jnp.squeeze(hm_true, axis=1).astype(jnp.float32)
    pos_ind = (gt == 1.0).astype(jnp.float32)
    neg_ind = (gt < 1.0).astype(jnp.float32)
    ppw = jnp.where(hp > 0.5, pos_pred_weight, 1.0)
    neg_w = (1.0 - gt) ** 4
    pc = jnp.clip(hp, 1e-4, 1.0 - 1e-4)
    pos_loss = jnp.sum(jnp.log(pc) * (1.0 - pc) ** 2 * pos_ind * ppw)
    neg_loss = jnp.sum(jnp.log(1.0 - pc) * pc ** 2 * neg_w * neg_ind * ppw)
    num_pos = jnp.sum(pos_ind)
    keypoint = jnp.where(num_pos > 0.0,
                         -(pos_loss + neg_loss) / jnp.maximum(num_pos, 1.0),
                         -neg_loss)
    od = jnp.sum(jnp.abs(om_pred.astype(jnp.float32)
                         - om_true.astype(jnp.float32)), axis=1)
    offset = jnp.sum(pos_ind * jnp.swapaxes(od, -1, -2))
    return keypoint + offset * l_off


def _make_inputs(key, B, C, H, W, n_keypoints, dtype=jnp.float32):
    k1, k2, k3, k4 = jax.random.split(key, 4)
    hm_pred = jax.random.uniform(k1, (B, H, W), jnp.float32)
    hm_true = jax.random.uniform(k2, (B, 1, H, W), jnp.float32,
                                 minval=0.0, maxval=0.95)
    for b in range(B):
        for k in range(n_keypoints):
            y = (3 + 2 * b + 5 * k) % H
            x = (5 + b + 3 * k) % W
            hm_true = hm_true.at[b, 0, y, x].set(1.0)
    om_pred = jax.random.normal(k3, (B, C, H, W), jnp.float32)
    om_true = jax.random.normal(k4, (B, C, H, W), jnp.float32)
    return (hm_pred.astype(dtype), om_pred.astype(dtype),
            hm_true.astype(dtype), om_true.astype(dtype))


def _check(name, args, tol=1e-4, **kw):
    ref = _reference_loss(*args)
    out = centernet_loss_multiball(*args, **kw)
    jax.block_until_ready(out)
    assert jnp.allclose(out, ref, rtol=tol, atol=tol), (name, out, ref)


if __name__ == "__main__":
    C, H, W = 2, 16, 16
    key = jax.random.PRNGKey(0)
    k0, k1, k2, k3 = jax.random.split(key, 4)
    in_bytes_per_sample_f32 = H * W * 4 * (2 + 2 * C)

    # 1) default tiling: whole batch in one tile, single-step grid.
    _check("default", _make_inputs(k0, 2, C, H, W, n_keypoints=2))

    # 2) B=5, tiny tile target -> tB=1, grid (2,3): exercises the 2-way core
    #    split, cross-step accumulation, and a fully-masked padded tile.
    _check("split+pad", _make_inputs(k1, 5, C, H, W, n_keypoints=2),
           block_bytes_target=1)

    # 3) B=3 with tB=2 -> grid (2,1): tail row inside the last real tile masked.
    _check("tail-mask", _make_inputs(k2, 3, C, H, W, n_keypoints=1),
           block_bytes_target=2 * in_bytes_per_sample_f32)

    # 4) no keypoints: num_pos == 0 branch (loss = -neg_loss, no offset term).
    _check("no-keypoints", _make_inputs(k3, 2, C, H, W, n_keypoints=0))

    # 5) native bf16 inputs (half the HBM traffic; f32 accumulation inside).
    _check("bf16", _make_inputs(k0, 2, C, H, W, n_keypoints=2,
                                dtype=jnp.bfloat16), tol=2e-3)

    print("KERNEL_OK")
</pallas_src>

<mosaic_0001>
module attributes {stable_mosaic.version = 11 : i64} {
  func.func @_centernet_loss_kernel(%arg0: i32, %arg1: i32, %arg2: memref<2x16x16xf32, #tpu.memory_space<vmem>>, %arg3: memref<2x1x16x16xf32, #tpu.memory_space<vmem>>, %arg4: memref<2x2x16x16xf32, #tpu.memory_space<vmem>>, %arg5: memref<2x2x16x16xf32, #tpu.memory_space<vmem>>, %arg6: memref<1x8x128xf32, #tpu.memory_space<vmem>>, %arg7: memref<16x16xf32, #tpu.memory_space<vmem>>, %arg8: memref<16x16xf32, #tpu.memory_space<vmem>>, %arg9: memref<16x16xf32, #tpu.memory_space<vmem>>) attributes {dimension_semantics = [#tpu.dimension_semantics<parallel>, #tpu.dimension_semantics<arbitrary>], iteration_bounds = array<i64: 1, 1>, scalar_prefetch = 0 : i64, scratch_operands = 3 : i64, tpu.core_type = #tpu.core_type<tc>, window_params = [{transform_indices = @transform_0, window_bounds = array<i64: 2, 16, 16>}, {transform_indices = @transform_1, window_bounds = array<i64: 2, 1, 16, 16>}, {transform_indices = @transform_2, window_bounds = array<i64: 2, 2, 16, 16>}, {transform_indices = @transform_3, window_bounds = array<i64: 2, 2, 16, 16>}, {transform_indices = @transform_4, window_bounds = array<i64: 1, 8, 128>}]} {
    %c0_i32 = arith.constant 0 : i32
    %0 = arith.cmpi eq, %arg1, %c0_i32 : i32
    %1 = arith.extui %0 : i1 to i32
    %c0_i32_0 = arith.constant 0 : i32
    %2 = arith.cmpi ne, %1, %c0_i32_0 : i32
    scf.if %2 {
      %cst_42 = arith.constant 0.000000e+00 : f32
      %60 = vector.broadcast %cst_42 : f32 to vector<16x16xf32>
      %c0_43 = arith.constant 0 : index
      %c0_44 = arith.constant 0 : index
      %61 = vector.load %arg7[%c0_43, %c0_44] : memref<16x16xf32, #tpu.memory_space<vmem>>, vector<16x16xf32>
      tpu.vector_store %arg7[%c0_43, %c0_44], %60 {strides = array<i32>} : memref<16x16xf32, #tpu.memory_space<vmem>>, vector<16x16xf32>,
      %cst_45 = arith.constant 0.000000e+00 : f32
      %62 = vector.broadcast %cst_45 : f32 to vector<16x16xf32>
      %c0_46 = arith.constant 0 : index
      %c0_47 = arith.constant 0 : index
      %63 = vector.load %arg8[%c0_46, %c0_47] : memref<16x16xf32, #tpu.memory_space<vmem>>, vector<16x16xf32>
      tpu.vector_store %arg8[%c0_46, %c0_47], %62 {strides = array<i32>} : memref<16x16xf32, #tpu.memory_space<vmem>>, vector<16x16xf32>,
      %cst_48 = arith.constant 0.000000e+00 : f32
      %64 = vector.broadcast %cst_48 : f32 to vector<16x16xf32>
      %c0_49 = arith.constant 0 : index
      %c0_50 = arith.constant 0 : index
      %65 = vector.load %arg9[%c0_49, %c0_50] : memref<16x16xf32, #tpu.memory_space<vmem>>, vector<16x16xf32>
      tpu.vector_store %arg9[%c0_49, %c0_50], %64 {strides = array<i32>} : memref<16x16xf32, #tpu.memory_space<vmem>>, vector<16x16xf32>,
    } else {
    }
    %c0 = arith.constant 0 : index
    %c0_1 = arith.constant 0 : index
    %c0_2 = arith.constant 0 : index
    %3 = vector.load %arg2[%c0, %c0_1, %c0_2] : memref<2x16x16xf32, #tpu.memory_space<vmem>>, vector<2x16x16xf32>
    %c0_3 = arith.constant 0 : index
    %c0_4 = arith.constant 0 : index
    %c0_5 = arith.constant 0 : index
    %c0_6 = arith.constant 0 : index
    %4 = vector.load %arg3[%c0_3, %c0_4, %c0_5, %c0_6] : memref<2x1x16x16xf32, #tpu.memory_space<vmem>>, vector<2x1x16x16xf32>
    %5 = vector.shape_cast %4 : vector<2x1x16x16xf32> to vector<2x16x16xf32>
    %cst = arith.constant 1.000000e+00 : f32
    %6 = vector.broadcast %cst : f32 to vector<2x16x16xf32>
    %7 = arith.cmpf oeq, %5, %6 : vector<2x16x16xf32>
    %cst_7 = arith.constant 1.000000e+00 : f32
    %8 = vector.broadcast %cst_7 : f32 to vector<2x16x16xf32>
    %9 = arith.cmpf olt, %5, %8 : vector<2x16x16xf32>
    %10 = arith.ori %7, %9 : vector<2x16x16xi1>
    %cst_8 = arith.constant 9.99999974E-5 : f32
    %cst_9 = arith.constant 0.999899983 : f32
    %11 = vector.broadcast %cst_8 : f32 to vector<2x16x16xf32>
    %12 = arith.maximumf %11, %3 : vector<2x16x16xf32>
    %13 = vector.broadcast %cst_9 : f32 to vector<2x16x16xf32>
    %14 = arith.minimumf %13, %12 : vector<2x16x16xf32>
    %cst_10 = arith.constant 1.000000e+00 : f32
    %15 = vector.broadcast %cst_10 : f32 to vector<2x16x16xf32>
    %16 = arith.subf %15, %14 : vector<2x16x16xf32>
    %cst_11 = arith.constant 1.000000e+00 : f32
    %17 = vector.broadcast %cst_11 : f32 to vector<2x16x16xf32>
    %18 = arith.subf %17, %5 : vector<2x16x16xf32>
    %19 = arith.mulf %18, %18 : vector<2x16x16xf32>
    %20 = arith.select %7, %14, %16 : vector<2x16x16xi1>, vector<2x16x16xf32>
    %21 = math.log %20 : vector<2x16x16xf32>
    %22 = arith.mulf %16, %16 : vector<2x16x16xf32>
    %23 = arith.mulf %14, %14 : vector<2x16x16xf32>
    %24 = arith.mulf %19, %19 : vector<2x16x16xf32>
    %25 = arith.mulf %23, %24 : vector<2x16x16xf32>
    %26 = arith.select %7, %22, %25 : vector<2x16x16xi1>, vector<2x16x16xf32>
    %cst_12 = arith.constant 5.000000e-01 : f32
    %27 = vector.broadcast %cst_12 : f32 to vector<2x16x16xf32>
    %28 = arith.cmpf ogt, %3, %27 : vector<2x16x16xf32>
    %cst_13 = arith.constant 2.000000e+00 : f32
    %cst_14 = arith.constant 1.000000e+00 : f32
    %29 = vector.broadcast %cst_13 : f32 to vector<2x16x16xf32>
    %30 = vector.broadcast %cst_14 : f32 to vector<2x16x16xf32>
    %31 = arith.select %28, %29, %30 : vector<2x16x16xi1>, vector<2x16x16xf32>
    %32 = arith.mulf %21, %26 : vector<2x16x16xf32>
    %33 = arith.mulf %32, %31 : vector<2x16x16xf32>
    %cst_15 = arith.constant 0.000000e+00 : f32
    %34 = vector.broadcast %cst_15 : f32 to vector<2x16x16xf32>
    %35 = arith.select %10, %33, %34 : vector<2x16x16xi1>, vector<2x16x16xf32>
    %36 = arith.extui %7 : vector<2x16x16xi1> to vector<2x16x16xi32>
    %37 = arith.sitofp %36 : vector<2x16x16xi32> to vector<2x16x16xf32>
    %c0_16 = arith.constant 0 : index
    %c0_17 = arith.constant 0 : index
    %38 = vector.load %arg7[%c0_16, %c0_17] : memref<16x16xf32, #tpu.memory_space<vmem>>, vector<16x16xf32>
    %cst_18 = arith.constant dense<0.000000e+00> : vector<16x16xf32>
    %39 = vector.multi_reduction <add>, %35, %cst_18 [0] : vector<2x16x16xf32> to vector<16x16xf32>
    %40 = arith.addf %38, %39 : vector<16x16xf32>
    %c0_19 = arith.constant 0 : index
    %c0_20 = arith.constant 0 : index
    %41 = vector.load %arg7[%c0_19, %c0_20] : memref<16x16xf32, #tpu.memory_space<vmem>>, vector<16x16xf32>
    tpu.vector_store %arg7[%c0_19, %c0_20], %40 {strides = array<i32>} : memref<16x16xf32, #tpu.memory_space<vmem>>, vector<16x16xf32>,
    %c0_21 = arith.constant 0 : index
    %c0_22 = arith.constant 0 : index
    %42 = vector.load %arg8[%c0_21, %c0_22] : memref<16x16xf32, #tpu.memory_space<vmem>>, vector<16x16xf32>
    %cst_23 = arith.constant dense<0.000000e+00> : vector<16x16xf32>
    %43 = vector.multi_reduction <add>, %37, %cst_23 [0] : vector<2x16x16xf32> to vector<16x16xf32>
    %44 = arith.addf %42, %43 : vector<16x16xf32>
    %c0_24 = arith.constant 0 : index
    %c0_25 = arith.constant 0 : index
    %45 = vector.load %arg8[%c0_24, %c0_25] : memref<16x16xf32, #tpu.memory_space<vmem>>, vector<16x16xf32>
    tpu.vector_store %arg8[%c0_24, %c0_25], %44 {strides = array<i32>} : memref<16x16xf32, #tpu.memory_space<vmem>>, vector<16x16xf32>,
    %c0_26 = arith.constant 0 : index
    %c0_27 = arith.constant 0 : index
    %c0_28 = arith.constant 0 : index
    %c0_29 = arith.constant 0 : index
    %46 = vector.load %arg4[%c0_26, %c0_27, %c0_28, %c0_29] : memref<2x2x16x16xf32, #tpu.memory_space<vmem>>, vector<2x2x16x16xf32>
    %c0_30 = arith.constant 0 : index
    %c0_31 = arith.constant 0 : index
    %c0_32 = arith.constant 0 : index
    %c0_33 = arith.constant 0 : index
    %47 = vector.load %arg5[%c0_30, %c0_31, %c0_32, %c0_33] : memref<2x2x16x16xf32, #tpu.memory_space<vmem>>, vector<2x2x16x16xf32>
    %48 = arith.subf %46, %47 : vector<2x2x16x16xf32>
    %49 = math.absf %48 : vector<2x2x16x16xf32>
    %cst_34 = arith.constant dense<0.000000e+00> : vector<2x16x16xf32>
    %50 = vector.multi_reduction <add>, %49, %cst_34 [1] : vector<2x2x16x16xf32> to vector<2x16x16xf32>
    %c0_35 = arith.constant 0 : index
    %c0_36 = arith.constant 0 : index
    %51 = vector.load %arg9[%c0_35, %c0_36] : memref<16x16xf32, #tpu.memory_space<vmem>>, vector<16x16xf32>
    %52 = tpu.transpose %50, [0, 2, 1] : vector<2x16x16xf32> -> vector<2x16x16xf32>
    %53 = arith.mulf %37, %52 : vector<2x16x16xf32>
    %cst_37 = arith.constant dense<0.000000e+00> : vector<16x16xf32>
    %54 = vector.multi_reduction <add>, %53, %cst_37 [0] : vector<2x16x16xf32> to vector<16x16xf32>
    %55 = arith.addf %51, %54 : vector<16x16xf32>
    %c0_38 = arith.constant 0 : index
    %c0_39 = arith.constant 0 : index
    %56 = vector.load %arg9[%c0_38, %c0_39] : memref<16x16xf32, #tpu.memory_space<vmem>>, vector<16x16xf32>
    tpu.vector_store %arg9[%c0_38, %c0_39], %55 {strides = array<i32>} : memref<16x16xf32, #tpu.memory_space<vmem>>, vector<16x16xf32>,
    %c0_i32_40 = arith.constant 0 : i32
    %57 = arith.cmpi eq, %arg1, %c0_i32_40 : i32
    %58 = arith.extui %57 : i1 to i32
    %c0_i32_41 = arith.constant 0 : i32
    %59 = arith.cmpi ne, %58, %c0_i32_41 : i32
    scf.if %59 {
      %c0_42 = arith.constant 0 : index
      %c0_43 = arith.constant 0 : index
      %60 = vector.load %arg7[%c0_42, %c0_43] : memref<16x16xf32, #tpu.memory_space<vmem>>, vector<16x16xf32>
      %61 = vector.shape_cast %60 : vector<16x16xf32> to vector<1x16x16xf32>
      %cst_44 = arith.constant dense<0.000000e+00> : vector<1xf32>
      %62 = vector.multi_reduction <add>, %61, %cst_44 [1, 2] : vector<1x16x16xf32> to vector<1xf32>
      %63 = vector.shape_cast %62 : vector<1xf32> to vector<1x1x1xf32>
      %64 = vector.extract %63[0, 0, 0] : f32 from vector<1x1x1xf32>
      %c0_45 = arith.constant 0 : index
      %c0_46 = arith.constant 0 : index
      %65 = vector.load %arg8[%c0_45, %c0_46] : memref<16x16xf32, #tpu.memory_space<vmem>>, vector<16x16xf32>
      %66 = vector.shape_cast %65 : vector<16x16xf32> to vector<1x16x16xf32>
      %cst_47 = arith.constant dense<0.000000e+00> : vector<1xf32>
      %67 = vector.multi_reduction <add>, %66, %cst_47 [1, 2] : vector<1x16x16xf32> to vector<1xf32>
      %68 = vector.shape_cast %67 : vector<1xf32> to vector<1x1x1xf32>
      %69 = vector.extract %68[0, 0, 0] : f32 from vector<1x1x1xf32>
      %c0_48 = arith.constant 0 : index
      %c0_49 = arith.constant 0 : index
      %70 = vector.load %arg9[%c0_48, %c0_49] : memref<16x16xf32, #tpu.memory_space<vmem>>, vector<16x16xf32>
      %71 = vector.shape_cast %70 : vector<16x16xf32> to vector<1x16x16xf32>
      %cst_50 = arith.constant dense<0.000000e+00> : vector<1xf32>
      %72 = vector.multi_reduction <add>, %71, %cst_50 [1, 2] : vector<1x16x16xf32> to vector<1xf32>
      %73 = vector.shape_cast %72 : vector<1xf32> to vector<1x1x1xf32>
      %74 = vector.extract %73[0, 0, 0] : f32 from vector<1x1x1xf32>
      %75 = tpu.iota {dimensions = array<i32: 1>} : vector<8x128xi32>
      %76 = tpu.iota {dimensions = array<i32: 0>} : vector<8x128xi32>
      %c0_i32_51 = arith.constant 0 : i32
      %77 = vector.broadcast %c0_i32_51 : i32 to vector<8x128xi32>
      %78 = arith.cmpi eq, %76, %77 : vector<8x128xi32>
      %c0_i32_52 = arith.constant 0 : i32
      %79 = vector.broadcast %c0_i32_52 : i32 to vector<8x128xi32>
      %80 = arith.cmpi eq, %75, %79 : vector<8x128xi32>
      %c1_i32 = arith.constant 1 : i32
      %81 = vector.broadcast %c1_i32 : i32 to vector<8x128xi32>
      %82 = arith.cmpi eq, %75, %81 : vector<8x128xi32>
      %c2_i32 = arith.constant 2 : i32
      %83 = vector.broadcast %c2_i32 : i32 to vector<8x128xi32>
      %84 = arith.cmpi eq, %75, %83 : vector<8x128xi32>
      %cst_53 = arith.constant 0.000000e+00 : f32
      %85 = vector.broadcast %74 : f32 to vector<8x128xf32>
      %86 = vector.broadcast %cst_53 : f32 to vector<8x128xf32>
      %87 = arith.select %84, %85, %86 : vector<8x128xi1>, vector<8x128xf32>
      %88 = vector.broadcast %69 : f32 to vector<8x128xf32>
      %89 = arith.select %82, %88, %87 : vector<8x128xi1>, vector<8x128xf32>
      %90 = vector.broadcast %64 : f32 to vector<8x128xf32>
      %91 = arith.select %80, %90, %89 : vector<8x128xi1>, vector<8x128xf32>
      %cst_54 = arith.constant 0.000000e+00 : f32
      %92 = vector.broadcast %cst_54 : f32 to vector<8x128xf32>
      %93 = arith.select %78, %91, %92 : vector<8x128xi1>, vector<8x128xf32>
      %c0_55 = arith.constant 0 : index
      %c0_56 = arith.constant 0 : index
      %c0_57 = arith.constant 0 : index
      %94 = vector.load %arg6[%c0_55, %c0_56, %c0_57] : memref<1x8x128xf32, #tpu.memory_space<vmem>>, vector<1x8x128xf32>
      %95 = vector.shape_cast %94 : vector<1x8x128xf32> to vector<8x128xf32>
      %96 = vector.shape_cast %93 : vector<8x128xf32> to vector<1x8x128xf32>
      tpu.vector_store %arg6[%c0_55, %c0_56, %c0_57], %96 {strides = array<i32>} : memref<1x8x128xf32, #tpu.memory_space<vmem>>, vector<1x8x128xf32>,
    } else {
    }
    return
  }
  func.func @transform_0(%arg0: i32, %arg1: i32) -> (i32, i32, i32) {
    %c1_i32 = arith.constant 1 : i32
    %0 = arith.muli %arg0, %c1_i32 : i32
    %1 = arith.addi %0, %arg1 : i32
    %c0_i32 = arith.constant 0 : i32
    %2 = arith.minsi %1, %c0_i32 : i32
    %c0_i32_0 = arith.constant 0 : i32
    %c0_i32_1 = arith.constant 0 : i32
    %c0_i32_2 = arith.constant 0 : i32
    return %2, %c0_i32_0, %c0_i32_1 : i32, i32, i32
  }
  func.func @transform_1(%arg0: i32, %arg1: i32) -> (i32, i32, i32, i32) {
    %c1_i32 = arith.constant 1 : i32
    %0 = arith.muli %arg0, %c1_i32 : i32
    %1 = arith.addi %0, %arg1 : i32
    %c0_i32 = arith.constant 0 : i32
    %2 = arith.minsi %1, %c0_i32 : i32
    %c0_i32_0 = arith.constant 0 : i32
    %c0_i32_1 = arith.constant 0 : i32
    %c0_i32_2 = arith.constant 0 : i32
    %c0_i32_3 = arith.constant 0 : i32
    return %2, %c0_i32_0, %c0_i32_1, %c0_i32_2 : i32, i32, i32, i32
  }
  func.func @transform_2(%arg0: i32, %arg1: i32) -> (i32, i32, i32, i32) {
    %c1_i32 = arith.constant 1 : i32
    %0 = arith.muli %arg0, %c1_i32 : i32
    %1 = arith.addi %0, %arg1 : i32
    %c0_i32 = arith.constant 0 : i32
    %2 = arith.minsi %1, %c0_i32 : i32
    %c0_i32_0 = arith.constant 0 : i32
    %c0_i32_1 = arith.constant 0 : i32
    %c0_i32_2 = arith.constant 0 : i32
    %c0_i32_3 = arith.constant 0 : i32
    return %2, %c0_i32_0, %c0_i32_1, %c0_i32_2 : i32, i32, i32, i32
  }
  func.func @transform_3(%arg0: i32, %arg1: i32) -> (i32, i32, i32, i32) {
    %c1_i32 = arith.constant 1 : i32
    %0 = arith.muli %arg0, %c1_i32 : i32
    %1 = arith.addi %0, %arg1 : i32
    %c0_i32 = arith.constant 0 : i32
    %2 = arith.minsi %1, %c0_i32 : i32
    %c0_i32_0 = arith.constant 0 : i32
    %c0_i32_1 = arith.constant 0 : i32
    %c0_i32_2 = arith.constant 0 : i32
    %c0_i32_3 = arith.constant 0 : i32
    return %2, %c0_i32_0, %c0_i32_1, %c0_i32_2 : i32, i32, i32, i32
  }
  func.func @transform_4(%arg0: i32, %arg1: i32) -> (i32, i32, i32) {
    %c0_i32 = arith.constant 0 : i32
    %c0_i32_0 = arith.constant 0 : i32
    %c0_i32_1 = arith.constant 0 : i32
    return %arg0, %c0_i32, %c0_i32_0 : i32, i32, i32
  }
}

</mosaic_0001>

<llo_original>
// kernel: tpu_custom_call.1
$region0: #{tpu_custom_call.1}
  #allocation0 [shape = 'u32[]', space=smem, size = 0x4, offset = 0x4, fixed_abs, tag = 'smem constant byte address 0x4 - core index']
  #allocation1 [shape = 'u32[144,128]{1,0:T(1,128)}', space=vmem, size = 0x12000, scoped, tag = 'internal scratch']
  #allocation2 [shape = 'f32[16,16]{1,0:T(8,128)}', space=vmem, size = 0x2000, scoped, tag = 'scratch operand']
  #allocation3 [shape = 'f32[16,16]{1,0:T(8,128)}', space=vmem, size = 0x2000, scoped, tag = 'scratch operand']
  #allocation4 [shape = 'f32[16,16]{1,0:T(8,128)}', space=vmem, size = 0x2000, scoped, tag = 'scratch operand']
  %s0 = inlined_call_operand.hbm [shape: f32[2,16,16], index: 0, kind: input, shape index: {}]
  %s1 = inlined_call_operand.hbm [shape: f32[2,1,16,16], index: 1, kind: input, shape index: {}]
  %s2 = inlined_call_operand.hbm [shape: f32[2,2,16,16], index: 2, kind: input, shape index: {}]
  %s3 = inlined_call_operand.hbm [shape: f32[2,2,16,16], index: 3, kind: input, shape index: {}]
  %s4 = inlined_call_operand.hbm [shape: f32[1,8,128], index: 4, kind: output, shape index: {}]
  %s5 = sld [smem:[#allocation0]]
  $region50: #{tpu_custom_call.1} parent=0
    _
  %s7 = ssub.s32 1, %s5
  %s8 = scalar_select 0, %s7, %s5
  $region1: #{tpu_custom_call.1} parent=0
    #allocation5 [shape = 'u8[16384]{0}', space=vmem, size = 0x4000, scoped, tag = 'input window, operand 0, single buffered']
    #allocation6 [shape = 's32[1]{0}', space=sflag, size = 0x4, scoped, tag = 'scoped memory for tpu_custom_call.1']
    #allocation7 [shape = 's32[1]{0}', space=sflag, size = 0x4, scoped, tag = 'scoped memory for tpu_custom_call.1']
    #allocation8 [shape = 'u8[16384]{0}', space=vmem, size = 0x4000, scoped, tag = 'input window, operand 1, single buffered']
    #allocation9 [shape = 's32[1]{0}', space=sflag, size = 0x4, scoped, tag = 'scoped memory for tpu_custom_call.1']
    #allocation10 [shape = 'u8[32768]{0}', space=vmem, size = 0x8000, scoped, tag = 'input window, operand 2, single buffered']
    #allocation11 [shape = 'u8[32768]{0}', space=vmem, size = 0x8000, scoped, tag = 'input window, operand 3, single buffered']
    #allocation12 [shape = 's32[1]{0}', space=sflag, size = 0x4, scoped, tag = 'scoped memory for tpu_custom_call.1']
    #allocation13 [shape = 'u8[4096]{0}', space=vmem, size = 0x1000, scoped, tag = 'output window, operand 0, single buffered']
    %9 = vsyncpa [#allocation6], 0
    %10 = vsyncpa [#allocation9], 0
    %11 = vsyncpa [#allocation12], 0
    %12 = vsyncpa [#allocation7], 0
    // Predicated region
    $region2: #{tpu_custom_call.1} parent=1 // pred_check
      _
    $region3: #{tpu_custom_call.1} parent=1 // pred_check_branch
      %14 = sbr.rel (0) target = $region5
    $region4: #{tpu_custom_call.1} parent=1 // pred_region
      %s15 = sadd.s32 0, 0
      %p16 = scmp.lt.s32.totalorder %s15, 0
      %s17 = scalar_select %p16, %s15, 0
      %s18 = smul.u32 2, %s17
      %s20 = ssub.s32 512, 512
      %21 = vsyncadd [#allocation6], %s20
      %s22 = smul.addr %s18, 2
      %s23 = smul.addr %s22, 128
      %s24 = scalar_lea.hbm %s0, %s23
      %s25 = sshll.u32 [#allocation5], 4
      %s26 = int_to_ptr.vmem [resolvable:$true] %s25
      %31 = dma.hbm_to_vmem [thread:$0]  %s24, 512, %s26, [#allocation6], 128, 128, 8
    $region5: #{tpu_custom_call.1} parent=1 // pred_fallthru
      _
    // Predicated region
    $region6: #{tpu_custom_call.1} parent=1 // pred_check
      _
    $region7: #{tpu_custom_call.1} parent=1 // pred_check_branch
      %33 = sbr.rel (0) target = $region9
    $region8: #{tpu_custom_call.1} parent=1 // pred_region
      %s34 = sadd.s32 0, 0
      %p35 = scmp.lt.s32.totalorder %s34, 0
      %s36 = scalar_select %p35, %s34, 0
      %s37 = smul.u32 2, %s36
      %s39 = ssub.s32 512, 512
      %40 = vsyncadd [#allocation9], %s39
      %s41 = smul.addr %s37, 2
      %s42 = smul.addr %s41, 128
      %s43 = scalar_lea.hbm %s1, %s42
      %s44 = sshll.u32 [#allocation8], 4
      %s45 = int_to_ptr.vmem [resolvable:$true] %s44
      %50 = dma.hbm_to_vmem [thread:$0]  %s43, 512, %s45, [#allocation9], 128, 128, 8
    $region9: #{tpu_custom_call.1} parent=1 // pred_fallthru
      _
    // Predicated region
    $region10: #{tpu_custom_call.1} parent=1 // pred_check
      _
    $region11: #{tpu_custom_call.1} parent=1 // pred_check_branch
      %52 = sbr.rel (0) target = $region13
    $region12: #{tpu_custom_call.1} parent=1 // pred_region
      %s53 = sadd.s32 0, 0
      %p54 = scmp.lt.s32.totalorder %s53, 0
      %s55 = scalar_select %p54, %s53, 0
      %s56 = smul.u32 2, %s55
      %s58 = ssub.s32 1024, 1024
      %59 = vsyncadd [#allocation9], %s58
      %s60 = smul.addr %s56, 4
      %s61 = smul.addr %s60, 128
      %s62 = scalar_lea.hbm %s2, %s61
      %s63 = sshll.u32 [#allocation10], 4
      %s64 = int_to_ptr.vmem [resolvable:$true] %s63
      %69 = dma.hbm_to_vmem [thread:$0]  %s62, 1024, %s64, [#allocation9], 128, 128, 8
    $region13: #{tpu_custom_call.1} parent=1 // pred_fallthru
      _
    // Predicated region
    $region14: #{tpu_custom_call.1} parent=1 // pred_check
      _
    $region15: #{tpu_custom_call.1} parent=1 // pred_check_branch
      %71 = sbr.rel (0) target = $region17
    $region16: #{tpu_custom_call.1} parent=1 // pred_region
      %s72 = sadd.s32 0, 0
      %p73 = scmp.lt.s32.totalorder %s72, 0
      %s74 = scalar_select %p73, %s72, 0
      %s75 = smul.u32 2, %s74
      %s77 = ssub.s32 1024, 1024
      %78 = vsyncadd [#allocation12], %s77
      %s79 = smul.addr %s75, 4
      %s80 = smul.addr %s79, 128
      %s81 = scalar_lea.hbm %s3, %s80
      %s82 = sshll.u32 [#allocation11], 4
      %s83 = int_to_ptr.vmem [resolvable:$true] %s82
      %88 = dma.hbm_to_vmem [thread:$0]  %s81, 1024, %s83, [#allocation12], 128, 128, 8
    $region17: #{tpu_custom_call.1} parent=1 // pred_fallthru
      _
    // Predicated region
    $region18: #{tpu_custom_call.1} parent=1 // pred_check
      _
    $region19: #{tpu_custom_call.1} parent=1 // pred_check_branch
      %90 = sbr.rel (0) target = $region21
    $region20: #{tpu_custom_call.1} parent=1 // pred_region
      %91 = dma.done [#allocation6], 512
    $region21: #{tpu_custom_call.1} parent=1 // pred_fallthru
      _
    // Predicated region
    $region22: #{tpu_custom_call.1} parent=1 // pred_check
      _
    $region23: #{tpu_custom_call.1} parent=1 // pred_check_branch
      %93 = sbr.rel (0) target = $region25
    $region24: #{tpu_custom_call.1} parent=1 // pred_region
      %94 = dma.done [#allocation9], 512
    $region25: #{tpu_custom_call.1} parent=1 // pred_fallthru
      _
    // Predicated region
    $region26: #{tpu_custom_call.1} parent=1 // pred_check
      _
    $region27: #{tpu_custom_call.1} parent=1 // pred_check_branch
      %96 = sbr.rel (0) target = $region29
    $region28: #{tpu_custom_call.1} parent=1 // pred_region
      %97 = dma.done [#allocation9], 1024
    $region29: #{tpu_custom_call.1} parent=1 // pred_fallthru
      _
    // Predicated region
    $region30: #{tpu_custom_call.1} parent=1 // pred_check
      _
    $region31: #{tpu_custom_call.1} parent=1 // pred_check_branch
      %99 = sbr.rel (0) target = $region33
    $region32: #{tpu_custom_call.1} parent=1 // pred_region
      %100 = dma.done [#allocation12], 1024
    $region33: #{tpu_custom_call.1} parent=1 // pred_fallthru
      _
    %s101 = sadd.s32 0, 0
    %p102 = scmp.lt.s32.totalorder %s101, 0
    %s103 = scalar_select %p102, %s101, 0
    %s104 = smul.u32 2, %s103
    %s105 = sadd.s32 0, 0
    %p106 = scmp.lt.s32.totalorder %s105, 0
    %s107 = scalar_select %p106, %s105, 0
    %s108 = smul.u32 2, %s107
    %s109 = sadd.s32 0, 0
    %p110 = scmp.lt.s32.totalorder %s109, 0
    %s111 = scalar_select %p110, %s109, 0
    %s112 = smul.u32 2, %s111
    %s113 = sadd.s32 0, 0
    %p114 = scmp.lt.s32.totalorder %s113, 0
    %s115 = scalar_select %p114, %s113, 0
    %s116 = smul.u32 2, %s115
    %p117 = scmp.eq.s32.totalorder 0, 0
    // Predicated region
    $region34: #{tpu_custom_call.1} parent=1 // pred_check
      %p118 = pneg %p117
    $region35: #{tpu_custom_call.1} parent=1 // pred_check_branch
      %120 = sbr.rel (%p118) target = $region37
    $region36: #{tpu_custom_call.1} parent=1 // pred_region
      %vm121 = vcmask 130048
      %122 = vst.msk [vmem:[#allocation2] sm:$0xff] %vm121, 0.0
      %123 = vst.msk [vmem:[#allocation2 + $0x8] sm:$0xff] %vm121, 0.0
      %124 = vst.msk [vmem:[#allocation3] sm:$0xff] %vm121, 0.0
      %125 = vst.msk [vmem:[#allocation3 + $0x8] sm:$0xff] %vm121, 0.0
      %126 = vst.msk [vmem:[#allocation4] sm:$0xff] %vm121, 0.0
      %127 = vst.msk [vmem:[#allocation4 + $0x8] sm:$0xff] %vm121, 0.0
    $region37: #{tpu_custom_call.1} parent=1 // pred_fallthru
      _
    %v128 = vld [vmem:[#allocation5] sm:$0xff]
    %v129 = vld [vmem:[#allocation5 + $0x8] sm:$0xff]
    %v130 = vld [vmem:[#allocation5 + $0x10] sm:$0xff]
    %v131 = vld [vmem:[#allocation5 + $0x18] sm:$0xff]
    %v132 = vld [vmem:[#allocation8] sm:$0xff]
    %v133 = vld [vmem:[#allocation8 + $0x8] sm:$0xff]
    %v134 = vld [vmem:[#allocation8 + $0x10] sm:$0xff]
    %v135 = vld [vmem:[#allocation8 + $0x18] sm:$0xff]
    %vm136 = vcmp.eq.f32.partialorder %v132, 1.0
    %vm137 = vcmp.eq.f32.partialorder %v133, 1.0
    %vm138 = vcmp.eq.f32.partialorder %v134, 1.0
    %vm139 = vcmp.eq.f32.partialorder %v135, 1.0
    %vm140 = vcmp.lt.f32.partialorder %v132, 1.0
    %vm141 = vcmp.lt.f32.partialorder %v133, 1.0
    %vm142 = vcmp.lt.f32.partialorder %v134, 1.0
    %vm143 = vcmp.lt.f32.partialorder %v135, 1.0
    %vm144 = vmor %vm136, %vm140
    %vm145 = vmor %vm137, %vm141
    %vm146 = vmor %vm138, %vm142
    %vm147 = vmor %vm139, %vm143
    %v148 = vmax.f32 %v128, 0.0001
    %v149 = vmax.f32 %v129, 0.0001
    %v150 = vmax.f32 %v130, 0.0001
    %v151 = vmax.f32 %v131, 0.0001
    %v152 = vmin.f32 %v148, 0.9999
    %v153 = vmin.f32 %v149, 0.9999
    %v154 = vmin.f32 %v150, 0.9999
    %v155 = vmin.f32 %v151, 0.9999
    %v156 = vsub.f32 1.0, %v152
    %v157 = vsub.f32 1.0, %v153
    %v158 = vsub.f32 1.0, %v154
    %v159 = vsub.f32 1.0, %v155
    %v160 = vsub.f32 1.0, %v132
    %v161 = vsub.f32 1.0, %v133
    %v162 = vsub.f32 1.0, %v134
    %v163 = vsub.f32 1.0, %v135
    %v164 = vmul.f32 %v160, %v160
    %v165 = vmul.f32 %v161, %v161
    %v166 = vmul.f32 %v162, %v162
    %v167 = vmul.f32 %v163, %v163
    %v168 = vsel %vm136, %v152, %v156
    %v169 = vsel %vm137, %v153, %v157
    %v170 = vsel %vm138, %v154, %v158
    %v171 = vsel %vm139, %v155, %v159
    %v172 = vlog2.pop %v168
    %v173 = vmul.f32 %v172, 0.6931472
    %v174 = vlog2.pop %v169
    %v175 = vmul.f32 %v174, 0.6931472
    %v176 = vlog2.pop %v170
    %v177 = vmul.f32 %v176, 0.6931472
    %v178 = vlog2.pop %v171
    %v179 = vmul.f32 %v178, 0.6931472
    %v180 = vmul.f32 %v156, %v156
    %v181 = vmul.f32 %v157, %v157
    %v182 = vmul.f32 %v158, %v158
    %v183 = vmul.f32 %v159, %v159
    %v184 = vmul.f32 %v152, %v152
    %v185 = vmul.f32 %v153, %v153
    %v186 = vmul.f32 %v154, %v154
    %v187 = vmul.f32 %v155, %v155
    %v188 = vmul.f32 %v164, %v164
    %v189 = vmul.f32 %v165, %v165
    %v190 = vmul.f32 %v166, %v166
    %v191 = vmul.f32 %v167, %v167
    %v192 = vmul.f32 %v184, %v188
    %v193 = vmul.f32 %v185, %v189
    %v194 = vmul.f32 %v186, %v190
    %v195 = vmul.f32 %v187, %v191
    %v196 = vsel %vm136, %v180, %v192
    %v197 = vsel %vm137, %v181, %v193
    %v198 = vsel %vm138, %v182, %v194
    %v199 = vsel %vm139, %v183, %v195
    %vm200 = vcmp.gt.f32.partialorder %v128, 0.5
    %vm201 = vcmp.gt.f32.partialorder %v129, 0.5
    %vm202 = vcmp.gt.f32.partialorder %v130, 0.5
    %vm203 = vcmp.gt.f32.partialorder %v131, 0.5
    %v204 = vsel %vm200, 2.0, 1.0
    %v205 = vsel %vm201, 2.0, 1.0
    %v206 = vsel %vm202, 2.0, 1.0
    %v207 = vsel %vm203, 2.0, 1.0
    %v208 = vmul.f32 %v173, %v196
    %v209 = vmul.f32 %v175, %v197
    %v210 = vmul.f32 %v177, %v198
    %v211 = vmul.f32 %v179, %v199
    %v212 = vmul.f32 %v208, %v204
    %v213 = vmul.f32 %v209, %v205
    %v214 = vmul.f32 %v210, %v206
    %v215 = vmul.f32 %v211, %v207
    %v216 = vsel %vm144, %v212, 0.0
    %v217 = vsel %vm145, %v213, 0.0
    %v218 = vsel %vm146, %v214, 0.0
    %v219 = vsel %vm147, %v215, 0.0
    %v220 = vsel %vm136, 1, 0
    %v221 = vsel %vm137, 1, 0
    %v222 = vsel %vm138, 1, 0
    %v223 = vsel %vm139, 1, 0
    %v224 = vcvt.s32.f32 %v220
    %v225 = vcvt.s32.f32 %v221
    %v226 = vcvt.s32.f32 %v222
    %v227 = vcvt.s32.f32 %v223
    %v228 = vld [vmem:[#allocation2] sm:$0xff]
    %v229 = vld [vmem:[#allocation2 + $0x8] sm:$0xff]
    %vm230 = vcmask 130048
    %v231 = vsel %vm230, %v216, 0.0
    %v232 = vsel %vm230, %v218, 0.0
    %v233 = vadd.f32 %v231, %v232
    %v234 = vsel %vm230, %v217, 0.0
    %v235 = vsel %vm230, %v219, 0.0
    %v236 = vadd.f32 %v234, %v235
    %v237 = vadd.f32 %v228, %v233
    %v238 = vadd.f32 %v229, %v236
    %239 = vst.msk [vmem:[#allocation2] sm:$0xff] %vm230, %v237
    %240 = vst.msk [vmem:[#allocation2 + $0x8] sm:$0xff] %vm230, %v238
    %v241 = vld [vmem:[#allocation3] sm:$0xff]
    %v242 = vld [vmem:[#allocation3 + $0x8] sm:$0xff]
    %v243 = vsel %vm230, %v224, 0.0
    %v244 = vsel %vm230, %v226, 0.0
    %v245 = vadd.f32 %v243, %v244
    %v246 = vsel %vm230, %v225, 0.0
    %v247 = vsel %vm230, %v227, 0.0
    %v248 = vadd.f32 %v246, %v247
    %v249 = vadd.f32 %v241, %v245
    %v250 = vadd.f32 %v242, %v248
    %251 = vst.msk [vmem:[#allocation3] sm:$0xff] %vm230, %v249
    %252 = vst.msk [vmem:[#allocation3 + $0x8] sm:$0xff] %vm230, %v250
    %v253 = vld [vmem:[#allocation10] sm:$0xff]
    %v254 = vld [vmem:[#allocation10 + $0x8] sm:$0xff]
    %v255 = vld [vmem:[#allocation10 + $0x10] sm:$0xff]
    %v256 = vld [vmem:[#allocation10 + $0x18] sm:$0xff]
    %v257 = vld [vmem:[#allocation10 + $0x20] sm:$0xff]
    %v258 = vld [vmem:[#allocation10 + $0x28] sm:$0xff]
    %v259 = vld [vmem:[#allocation10 + $0x30] sm:$0xff]
    %v260 = vld [vmem:[#allocation10 + $0x38] sm:$0xff]
    %v261 = vld [vmem:[#allocation11] sm:$0xff]
    %v262 = vld [vmem:[#allocation11 + $0x8] sm:$0xff]
    %v263 = vld [vmem:[#allocation11 + $0x10] sm:$0xff]
    %v264 = vld [vmem:[#allocation11 + $0x18] sm:$0xff]
    %v265 = vld [vmem:[#allocation11 + $0x20] sm:$0xff]
    %v266 = vld [vmem:[#allocation11 + $0x28] sm:$0xff]
    %v267 = vld [vmem:[#allocation11 + $0x30] sm:$0xff]
    %v268 = vld [vmem:[#allocation11 + $0x38] sm:$0xff]
    %v269 = vsub.f32 %v253, %v261
    %v270 = vsub.f32 %v254, %v262
    %v271 = vsub.f32 %v255, %v263
    %v272 = vsub.f32 %v256, %v264
    %v273 = vsub.f32 %v257, %v265
    %v274 = vsub.f32 %v258, %v266
    %v275 = vsub.f32 %v259, %v267
    %v276 = vsub.f32 %v260, %v268
    %v277 = vand.u32 2147483647, %v269
    %v278 = vand.u32 2147483647, %v270
    %v279 = vand.u32 2147483647, %v271
    %v280 = vand.u32 2147483647, %v272
    %v281 = vand.u32 2147483647, %v273
    %v282 = vand.u32 2147483647, %v274
    %v283 = vand.u32 2147483647, %v275
    %v284 = vand.u32 2147483647, %v276
    %v285 = vsel %vm230, %v277, 0.0
    %v286 = vsel %vm230, %v279, 0.0
    %v287 = vadd.f32 %v285, %v286
    %v288 = vsel %vm230, %v278, 0.0
    %v289 = vsel %vm230, %v280, 0.0
    %v290 = vadd.f32 %v288, %v289
    %v291 = vsel %vm230, %v281, 0.0
    %v292 = vsel %vm230, %v283, 0.0
    %v293 = vadd.f32 %v291, %v292
    %v294 = vsel %vm230, %v282, 0.0
    %v295 = vsel %vm230, %v284, 0.0
    %v296 = vadd.f32 %v294, %v295
    %v297 = vld [vmem:[#allocation4] sm:$0xff]
    %v298 = vld [vmem:[#allocation4 + $0x8] sm:$0xff]
    %299 = vxpose.xlu0.b32.start [1/16] %v287, 128
    %300 = vxpose.xlu0.b32.cont [2/16] %v290, 128
    %301 = vxpose.xlu0.b32.cont [3/16] 0.0, 128
    %302 = vxpose.xlu0.b32.cont [4/16] 0.0, 128
    %303 = vxpose.xlu0.b32.cont [5/16] 0.0, 128
    %304 = vxpose.xlu0.b32.cont [6/16] 0.0, 128
    %305 = vxpose.xlu0.b32.cont [7/16] 0.0, 128
    %306 = vxpose.xlu0.b32.cont [8/16] 0.0, 128
    %307 = vxpose.xlu0.b32.cont [9/16] 0.0, 128
    %308 = vxpose.xlu0.b32.cont [10/16] 0.0, 128
    %309 = vxpose.xlu0.b32.cont [11/16] 0.0, 128
    %310 = vxpose.xlu0.b32.cont [12/16] 0.0, 128
    %311 = vxpose.xlu0.b32.cont [13/16] 0.0, 128
    %312 = vxpose.xlu0.b32.cont [14/16] 0.0, 128
    %313 = vxpose.xlu0.b32.cont [15/16] 0.0, 128
    %314 = vxpose.xlu0.b32.end [16/16] 0.0, 128
    %v315 = vpop.trf.xlu0
    %v316 = vpop.trf.xlu0
    %v317 = vpop.trf.xlu0
    %v318 = vpop.trf.xlu0
    %v319 = vpop.trf.xlu0
    %v320 = vpop.trf.xlu0
    %v321 = vpop.trf.xlu0
    %v322 = vpop.trf.xlu0
    %v323 = vpop.trf.xlu0
    %v324 = vpop.trf.xlu0
    %v325 = vpop.trf.xlu0
    %v326 = vpop.trf.xlu0
    %v327 = vpop.trf.xlu0
    %v328 = vpop.trf.xlu0
    %v329 = vpop.trf.xlu0
    %v330 = vpop.trf.xlu0
    %331 = vxpose.xlu0.b32.start [1/16] %v293, 128
    %332 = vxpose.xlu0.b32.cont [2/16] %v296, 128
    %333 = vxpose.xlu0.b32.cont [3/16] 0.0, 128
    %334 = vxpose.xlu0.b32.cont [4/16] 0.0, 128
    %335 = vxpose.xlu0.b32.cont [5/16] 0.0, 128
    %336 = vxpose.xlu0.b32.cont [6/16] 0.0, 128
    %337 = vxpose.xlu0.b32.cont [7/16] 0.0, 128
    %338 = vxpose.xlu0.b32.cont [8/16] 0.0, 128
    %339 = vxpose.xlu0.b32.cont [9/16] 0.0, 128
    %340 = vxpose.xlu0.b32.cont [10/16] 0.0, 128
    %341 = vxpose.xlu0.b32.cont [11/16] 0.0, 128
    %342 = vxpose.xlu0.b32.cont [12/16] 0.0, 128
    %343 = vxpose.xlu0.b32.cont [13/16] 0.0, 128
    %344 = vxpose.xlu0.b32.cont [14/16] 0.0, 128
    %345 = vxpose.xlu0.b32.cont [15/16] 0.0, 128
    %346 = vxpose.xlu0.b32.end [16/16] 0.0, 128
    %v347 = vpop.trf.xlu0
    %v348 = vpop.trf.xlu0
    %v349 = vpop.trf.xlu0
    %v350 = vpop.trf.xlu0
    %v351 = vpop.trf.xlu0
    %v352 = vpop.trf.xlu0
    %v353 = vpop.trf.xlu0
    %v354 = vpop.trf.xlu0
    %v355 = vpop.trf.xlu0
    %v356 = vpop.trf.xlu0
    %v357 = vpop.trf.xlu0
    %v358 = vpop.trf.xlu0
    %v359 = vpop.trf.xlu0
    %v360 = vpop.trf.xlu0
    %v361 = vpop.trf.xlu0
    %v362 = vpop.trf.xlu0
    %v363 = vmul.f32 %v224, %v315
    %v364 = vmul.f32 %v225, %v316
    %v365 = vmul.f32 %v226, %v347
    %v366 = vmul.f32 %v227, %v348
    %v367 = vsel %vm230, %v363, 0.0
    %v368 = vsel %vm230, %v365, 0.0
    %v369 = vadd.f32 %v367, %v368
    %v370 = vsel %vm230, %v364, 0.0
    %v371 = vsel %vm230, %v366, 0.0
    %v372 = vadd.f32 %v370, %v371
    %v373 = vadd.f32 %v297, %v369
    %v374 = vadd.f32 %v298, %v372
    %375 = vst.msk [vmem:[#allocation4] sm:$0xff] %vm230, %v373
    %376 = vst.msk [vmem:[#allocation4 + $0x8] sm:$0xff] %vm230, %v374
    // Predicated region
    $region38: #{tpu_custom_call.1} parent=1 // pred_check
      %p377 = pneg %p117
    $region39: #{tpu_custom_call.1} parent=1 // pred_check_branch
      %379 = sbr.rel (%p377) target = $region41
    $region40: #{tpu_custom_call.1} parent=1 // pred_region
      %v380 = vld [vmem:[#allocation2] sm:$0xff]
      %v381 = vld [vmem:[#allocation2 + $0x8] sm:$0xff]
      %v382 = vsel %vm230, %v380, 0.0
      %v383 = vsel %vm230, %v381, 0.0
      %v384 = vadd.f32 %v382, %v383
      %385 = vadd.xlane.f32.xlu0 %v384
      %v386 = vpop.xlane.xlu0 %385
      %v387 = vrot.slane %v386, 4
      %v388 = vadd.f32 %v386, %v387
      %v389 = vrot.slane %v388, 2
      %v390 = vadd.f32 %v388, %v389
      %v391 = vrot.slane %v390, 1
      %v392 = vadd.f32 %v390, %v391
      %s393 = vtos %v392
      %v394 = vld [vmem:[#allocation3] sm:$0xff]
      %v395 = vld [vmem:[#allocation3 + $0x8] sm:$0xff]
      %v396 = vsel %vm230, %v394, 0.0
      %v397 = vsel %vm230, %v395, 0.0
      %v398 = vadd.f32 %v396, %v397
      %399 = vadd.xlane.f32.xlu0 %v398
      %v400 = vpop.xlane.xlu0 %399
      %v401 = vrot.slane %v400, 4
      %v402 = vadd.f32 %v400, %v401
      %v403 = vrot.slane %v402, 2
      %v404 = vadd.f32 %v402, %v403
      %v405 = vrot.slane %v404, 1
      %v406 = vadd.f32 %v404, %v405
      %s407 = vtos %v406
      %v408 = vld [vmem:[#allocation4] sm:$0xff]
      %v409 = vld [vmem:[#allocation4 + $0x8] sm:$0xff]
      %v410 = vsel %vm230, %v408, 0.0
      %v411 = vsel %vm230, %v409, 0.0
      %v412 = vadd.f32 %v410, %v411
      %413 = vadd.xlane.f32.xlu0 %v412
      %v414 = vpop.xlane.xlu0 %413
      %v415 = vrot.slane %v414, 4
      %v416 = vadd.f32 %v414, %v415
      %v417 = vrot.slane %v416, 2
      %v418 = vadd.f32 %v416, %v417
      %v419 = vrot.slane %v418, 1
      %v420 = vadd.f32 %v418, %v419
      %s421 = vtos %v420
      %v422 = vlaneseq
      %v423 = vand.u32 %v422, 127
      %v424 = vlaneseq
      %v425 = vshrl.u32 %v424, 7
      %vm426 = vcmp.eq.s32.totalorder %v425, 0
      %vm427 = vcmp.eq.s32.totalorder %v423, 0
      %vm428 = vcmp.eq.s32.totalorder %v423, 1
      %vm429 = vcmp.eq.s32.totalorder %v423, 2
      %v430 = vstv %s421
      %v431 = vsel %vm429, %v430, 0.0
      %v432 = vstv %s407
      %v433 = vsel %vm428, %v432, %v431
      %v434 = vstv %s393
      %v435 = vsel %vm427, %v434, %v433
      %v436 = vsel %vm426, %v435, 0.0
      %437 = vst [vmem:[#allocation13] sm:$0xff] %v436
    $region41: #{tpu_custom_call.1} parent=1 // pred_fallthru
      _
    // Predicated region
    $region42: #{tpu_custom_call.1} parent=1 // pred_check
      _
    $region43: #{tpu_custom_call.1} parent=1 // pred_check_branch
      %439 = sbr.rel (0) target = $region45
    $region44: #{tpu_custom_call.1} parent=1 // pred_region
      %s441 = ssub.s32 128, 128
      %442 = vsyncadd [#allocation7], %s441
      %s444 = sshll.u32 [#allocation13], 4
      %s445 = int_to_ptr.vmem [resolvable:$true] %s444
      %447 = dma.vmem_to_hbm [thread:$0]  %s445, 128, %s4, [#allocation7]
    $region45: #{tpu_custom_call.1} parent=1 // pred_fallthru
      _
    // Predicated region
    $region46: #{tpu_custom_call.1} parent=1 // pred_check
      _
    $region47: #{tpu_custom_call.1} parent=1 // pred_check_branch
      %449 = sbr.rel (0) target = $region49
    $region48: #{tpu_custom_call.1} parent=1 // pred_region
      %450 = dma.done [#allocation7], 128
    $region49: #{tpu_custom_call.1} parent=1 // pred_fallthru
      _
    %451 = vsyncpa [#allocation6], 1
    %452 = vsyncpa [#allocation9], 1
    %453 = vsyncpa [#allocation12], 1
    %454 = vsyncpa [#allocation7], 1

</llo_original>
